<compile_context>
chip_gen: v7x
topology: tpu7x:2x2x1
jax: 0.10.0
libtpu: 0.0.40
codegen_flags: <defaults>
</compile_context>

<pallas_src>
import functools

import jax
import jax.numpy as jnp
from jax.experimental import pallas as pl
from jax.experimental.pallas import tpu as pltpu


def _qactivation2_kernel(xr_ref, xi_ref, or_ref, oi_ref, *, d, dd, scale):
    """Block shapes: xr/xi/or/oi = (TB, DDp); DDp = D*D padded to 128 lanes."""
    xr = xr_ref[...].astype(jnp.float32)          # (TB, DDp) lane-dense rows
    xi = xi_ref[...].astype(jnp.float32)
    ddp = xr.shape[-1]

    # Flat diagonal positions of a row-major (D, D) matrix: k = i*(D+1).
    # Exactly those k < D*D with k % (D+1) == 0 are diagonal elements.
    k = jax.lax.broadcasted_iota(jnp.int32, (1, ddp), 1)
    is_diag = jnp.logical_and(k % (d + 1) == 0, k < dd)          # (1, DDp)

    neg_big = jnp.float32(-3.0e38)

    # Per-row stable softmax over the diagonal lanes only.
    xs = xr * scale                                              # diag*scale on diag lanes
    m = jnp.max(jnp.where(is_diag, xs, neg_big), axis=-1, keepdims=True)   # (TB, 1)
    e = jnp.where(is_diag, jnp.exp(jnp.where(is_diag, xs - m, 0.0)), 0.0)  # (TB, DDp)
    z = jnp.sum(e, axis=-1, keepdims=True)                                 # (TB, 1)
    soft = e / z                                  # softmax values on diag lanes, 0 elsewhere

    # max_ratio = max_i(diag_i / soft_i) = max_i(diag_i * Z / e_i), per row.
    ratio = jnp.where(is_diag, xr * z / jnp.where(is_diag, e, 1.0), neg_big)
    max_ratio = jnp.max(ratio, axis=-1, keepdims=True)                     # (TB, 1)
    inv_r = 1.0 / max_ratio

    or_ref[...] = jnp.where(is_diag, soft, xr * inv_r).astype(or_ref.dtype)
    oi_ref[...] = jnp.where(is_diag, 0.0, xi * inv_r).astype(oi_ref.dtype)


def _min_grid_steps():
    """>=2 grid steps on dual-TensorCore v7x so the parallel axis shards."""
    try:
        kind = jax.devices()[0].device_kind.lower().replace(" ", "")
    except Exception:
        return 1
    return 2 if ("v7" in kind or "7x" in kind) else 1


def _pick_rows_per_block(batch, row_bytes, target_bytes=2 << 20, min_steps=1):
    """Matrices per block: full batch when small / it fits one ~2 MiB block
    on a single-TC chip, otherwise a multiple of 8 rows sized for ~2 MiB
    blocks (and at least `min_steps` grid steps)."""
    if batch <= 8:
        return batch                           # sublane dim == full array dim
    if min_steps <= 1 and batch * row_bytes <= target_bytes:
        return batch                           # single grid step (v5e/v6e)
    rows = max(8, (int(target_bytes // max(row_bytes, 1)) // 8) * 8)
    if min_steps > 1:
        cap = max(8, ((batch // min_steps) // 8) * 8)
        rows = min(rows, cap)
    return min(rows, batch)


def _vmem_limit_bytes(block_bytes):
    """2 in + 2 out streams, double-buffered, plus headroom; capped for v7x."""
    need = 8 * block_bytes + (4 << 20)
    cap = 40 << 20
    try:
        cap = min(cap, int(pltpu.get_tpu_info().vmem_capacity_bytes) * 5 // 8)
    except Exception:
        pass
    return int(min(cap, max(32 << 20, need)))


def qactivation2(x, scale_factor=1.0):
    """x is a list [x_real, x_imag], each shaped (B, D, D)."""
    if len(x) != 2:
        raise ValueError(
            "x should be called on a list of 2 inputs. Got "
            + str(len(x)) + " inputs.")
    x_real, x_imag = x
    B, D, D2 = x_real.shape
    assert D == D2 and x_imag.shape == x_real.shape
    DD = D * D
    DDp = ((DD + 127) // 128) * 128            # lane-dense guard for general D

    xr_flat = x_real.reshape(B, DD)
    xi_flat = x_imag.reshape(B, DD)
    if DDp != DD:
        pad = ((0, 0), (0, DDp - DD))
        xr_flat = jnp.pad(xr_flat, pad)
        xi_flat = jnp.pad(xi_flat, pad)

    row_bytes = DDp * x_real.dtype.itemsize
    tb = _pick_rows_per_block(B, row_bytes, target_bytes=2 << 20,
                              min_steps=_min_grid_steps())
    num_blocks = pl.cdiv(B, tb)
    vmem_limit = _vmem_limit_bytes(tb * row_bytes)

    kernel = functools.partial(_qactivation2_kernel, d=D, dd=DD,
                               scale=float(scale_factor))
    mat_spec = pl.BlockSpec((tb, DDp), lambda b: (b, 0))

    out_r, out_i = pl.pallas_call(
        kernel,
        out_shape=(jax.ShapeDtypeStruct((B, DDp), x_real.dtype),
                   jax.ShapeDtypeStruct((B, DDp), x_imag.dtype)),
        grid=(num_blocks,),
        in_specs=[mat_spec, mat_spec],
        out_specs=(mat_spec, mat_spec),
        compiler_params=pltpu.CompilerParams(
            dimension_semantics=("parallel",),
            vmem_limit_bytes=vmem_limit),
    )(xr_flat, xi_flat)

    if DDp != DD:
        out_r = out_r[:, :DD]
        out_i = out_i[:, :DD]
    return [out_r.reshape(B, D, D), out_i.reshape(B, D, D)]


def _reference(x, scale_factor=1.0):
    """Pure-JAX reference mirroring the PyTorch forward."""
    x_real, x_imag = x
    B, D, _ = x_real.shape
    diag = jnp.einsum("bii->bi", x_real)                        # (B, D)
    new_diag = jax.nn.softmax(diag * scale_factor, axis=-1)     # (B, D)
    max_ratio = jnp.max(diag / new_diag, axis=-1)               # (B,)
    xr = x_real / max_ratio[:, None, None]
    xi = x_imag / max_ratio[:, None, None]
    eye = jnp.eye(D, dtype=bool)[None]
    xr = jnp.where(eye, 0.0, xr) + new_diag[..., None] * jnp.eye(D)
    xi = jnp.where(eye, 0.0, xi)
    return [xr, xi]


if __name__ == "__main__":
    key = jax.random.PRNGKey(0)
    scale_factor = 1.0
    for (B, D) in [(4, 16), (32, 16), (5, 8)]:
        key, k1, k2 = jax.random.split(key, 3)
        x_real = jax.random.normal(k1, (B, D, D), dtype=jnp.float32)
        x_imag = jax.random.normal(k2, (B, D, D), dtype=jnp.float32)

        out_r, out_i = qactivation2([x_real, x_imag], scale_factor)
        jax.block_until_ready(out_r)
        jax.block_until_ready(out_i)

        ref_r, ref_i = _reference([x_real, x_imag], scale_factor)
        assert jnp.allclose(out_r, ref_r, atol=1e-5, rtol=1e-5), "real mismatch"
        assert jnp.allclose(out_i, ref_i, atol=1e-5, rtol=1e-5), "imag mismatch"

    print("KERNEL_OK")
</pallas_src>

<mosaic_0001>
module attributes {stable_mosaic.version = 11 : i64} {
  func.func @_qactivation2_kernel(%arg0: i32, %arg1: memref<4x256xf32, #tpu.memory_space<vmem>>, %arg2: memref<4x256xf32, #tpu.memory_space<vmem>>, %arg3: memref<4x256xf32, #tpu.memory_space<vmem>>, %arg4: memref<4x256xf32, #tpu.memory_space<vmem>>) attributes {dimension_semantics = [#tpu.dimension_semantics<parallel>], iteration_bounds = array<i64: 1>, scalar_prefetch = 0 : i64, scratch_operands = 0 : i64, tpu.core_type = #tpu.core_type<tc>, window_params = [{transform_indices = @transform_0, window_bounds = array<i64: 4, 256>}, {transform_indices = @transform_1, window_bounds = array<i64: 4, 256>}, {transform_indices = @transform_2, window_bounds = array<i64: 4, 256>}, {transform_indices = @transform_3, window_bounds = array<i64: 4, 256>}]} {
    %c0 = arith.constant 0 : index
    %c0_0 = arith.constant 0 : index
    %0 = vector.load %arg1[%c0, %c0_0] : memref<4x256xf32, #tpu.memory_space<vmem>>, vector<4x256xf32>
    %c0_1 = arith.constant 0 : index
    %c0_2 = arith.constant 0 : index
    %1 = vector.load %arg2[%c0_1, %c0_2] : memref<4x256xf32, #tpu.memory_space<vmem>>, vector<4x256xf32>
    %2 = tpu.iota {dimensions = array<i32: 1>} : vector<1x256xi32>
    %c17_i32 = arith.constant 17 : i32
    %c0_i32 = arith.constant 0 : i32
    %3 = arith.cmpi eq, %c17_i32, %c0_i32 : i32
    %c1_i32 = arith.constant 1 : i32
    %4 = arith.select %3, %c1_i32, %c17_i32 : i32
    %5 = vector.broadcast %4 : i32 to vector<1x256xi32>
    %6 = arith.remsi %2, %5 : vector<1x256xi32>
    %c0_i32_3 = arith.constant 0 : i32
    %7 = vector.broadcast %c0_i32_3 : i32 to vector<1x256xi32>
    %8 = arith.cmpi ne, %6, %7 : vector<1x256xi32>
    %c0_i32_4 = arith.constant 0 : i32
    %9 = vector.broadcast %c0_i32_4 : i32 to vector<1x256xi32>
    %10 = arith.cmpi slt, %6, %9 : vector<1x256xi32>
    %c0_i32_5 = arith.constant 0 : i32
    %11 = arith.cmpi slt, %4, %c0_i32_5 : i32
    %12 = vector.broadcast %11 : i1 to vector<1x256xi1>
    %13 = vector.broadcast %12 : vector<1x256xi1> to vector<1x256xi1>
    %14 = arith.xori %10, %13 : vector<1x256xi1>
    %15 = arith.andi %14, %8 : vector<1x256xi1>
    %16 = vector.broadcast %4 : i32 to vector<1x256xi32>
    %17 = arith.addi %6, %16 : vector<1x256xi32>
    %18 = arith.select %15, %17, %6 : vector<1x256xi1>, vector<1x256xi32>
    %c0_i32_6 = arith.constant 0 : i32
    %19 = vector.broadcast %c0_i32_6 : i32 to vector<1x256xi32>
    %20 = arith.cmpi eq, %18, %19 : vector<1x256xi32>
    %c256_i32 = arith.constant 256 : i32
    %21 = vector.broadcast %c256_i32 : i32 to vector<1x256xi32>
    %22 = arith.cmpi slt, %2, %21 : vector<1x256xi32>
    %23 = arith.andi %20, %22 : vector<1x256xi1>
    %cst = arith.constant 1.000000e+00 : f32
    %24 = vector.broadcast %cst : f32 to vector<4x256xf32>
    %25 = arith.mulf %0, %24 : vector<4x256xf32>
    %cst_7 = arith.constant -3.000000e+38 : f32
    %26 = vector.shape_cast %23 : vector<1x256xi1> to vector<1x256xi1>
    %27 = vector.broadcast %26 : vector<1x256xi1> to vector<4x256xi1>
    %28 = vector.broadcast %cst_7 : f32 to vector<4x256xf32>
    %29 = arith.select %27, %25, %28 : vector<4x256xi1>, vector<4x256xf32>
    %cst_8 = arith.constant dense<0xFF800000> : vector<4xf32>
    %30 = vector.multi_reduction <maximumf>, %29, %cst_8 [1] : vector<4x256xf32> to vector<4xf32>
    %31 = vector.shape_cast %30 : vector<4xf32> to vector<4x1xf32>
    %32 = vector.broadcast %31 : vector<4x1xf32> to vector<4x256xf32>
    %33 = arith.subf %25, %32 : vector<4x256xf32>
    %cst_9 = arith.constant 0.000000e+00 : f32
    %34 = vector.shape_cast %23 : vector<1x256xi1> to vector<1x256xi1>
    %35 = vector.broadcast %34 : vector<1x256xi1> to vector<4x256xi1>
    %36 = vector.broadcast %cst_9 : f32 to vector<4x256xf32>
    %37 = arith.select %35, %33, %36 : vector<4x256xi1>, vector<4x256xf32>
    %38 = math.exp %37 : vector<4x256xf32>
    %cst_10 = arith.constant 0.000000e+00 : f32
    %39 = vector.shape_cast %23 : vector<1x256xi1> to vector<1x256xi1>
    %40 = vector.broadcast %39 : vector<1x256xi1> to vector<4x256xi1>
    %41 = vector.broadcast %cst_10 : f32 to vector<4x256xf32>
    %42 = arith.select %40, %38, %41 : vector<4x256xi1>, vector<4x256xf32>
    %cst_11 = arith.constant dense<0.000000e+00> : vector<4xf32>
    %43 = vector.multi_reduction <add>, %42, %cst_11 [1] : vector<4x256xf32> to vector<4xf32>
    %44 = vector.shape_cast %43 : vector<4xf32> to vector<4x1xf32>
    %45 = vector.broadcast %44 : vector<4x1xf32> to vector<4x256xf32>
    %46 = arith.divf %42, %45 : vector<4x256xf32>
    %47 = vector.broadcast %44 : vector<4x1xf32> to vector<4x256xf32>
    %48 = arith.mulf %0, %47 : vector<4x256xf32>
    %cst_12 = arith.constant 1.000000e+00 : f32
    %49 = vector.shape_cast %23 : vector<1x256xi1> to vector<1x256xi1>
    %50 = vector.broadcast %49 : vector<1x256xi1> to vector<4x256xi1>
    %51 = vector.broadcast %cst_12 : f32 to vector<4x256xf32>
    %52 = arith.select %50, %42, %51 : vector<4x256xi1>, vector<4x256xf32>
    %53 = arith.divf %48, %52 : vector<4x256xf32>
    %cst_13 = arith.constant -3.000000e+38 : f32
    %54 = vector.shape_cast %23 : vector<1x256xi1> to vector<1x256xi1>
    %55 = vector.broadcast %54 : vector<1x256xi1> to vector<4x256xi1>
    %56 = vector.broadcast %cst_13 : f32 to vector<4x256xf32>
    %57 = arith.select %55, %53, %56 : vector<4x256xi1>, vector<4x256xf32>
    %cst_14 = arith.constant dense<0xFF800000> : vector<4xf32>
    %58 = vector.multi_reduction <maximumf>, %57, %cst_14 [1] : vector<4x256xf32> to vector<4xf32>
    %59 = vector.shape_cast %58 : vector<4xf32> to vector<4x1xf32>
    %cst_15 = arith.constant 1.000000e+00 : f32
    %60 = vector.broadcast %cst_15 : f32 to vector<4x1xf32>
    %61 = arith.divf %60, %59 : vector<4x1xf32>
    %62 = vector.broadcast %61 : vector<4x1xf32> to vector<4x256xf32>
    %63 = arith.mulf %0, %62 : vector<4x256xf32>
    %64 = vector.shape_cast %23 : vector<1x256xi1> to vector<1x256xi1>
    %65 = vector.broadcast %64 : vector<1x256xi1> to vector<4x256xi1>
    %66 = arith.select %65, %46, %63 : vector<4x256xi1>, vector<4x256xf32>
    %c0_16 = arith.constant 0 : index
    %c0_17 = arith.constant 0 : index
    %67 = vector.load %arg3[%c0_16, %c0_17] : memref<4x256xf32, #tpu.memory_space<vmem>>, vector<4x256xf32>
    tpu.vector_store %arg3[%c0_16, %c0_17], %66 {strides = array<i32>} : memref<4x256xf32, #tpu.memory_space<vmem>>, vector<4x256xf32>,
    %68 = vector.broadcast %61 : vector<4x1xf32> to vector<4x256xf32>
    %69 = arith.mulf %1, %68 : vector<4x256xf32>
    %cst_18 = arith.constant 0.000000e+00 : f32
    %70 = vector.shape_cast %23 : vector<1x256xi1> to vector<1x256xi1>
    %71 = vector.broadcast %70 : vector<1x256xi1> to vector<4x256xi1>
    %72 = vector.broadcast %cst_18 : f32 to vector<4x256xf32>
    %73 = arith.select %71, %72, %69 : vector<4x256xi1>, vector<4x256xf32>
    %c0_19 = arith.constant 0 : index
    %c0_20 = arith.constant 0 : index
    %74 = vector.load %arg4[%c0_19, %c0_20] : memref<4x256xf32, #tpu.memory_space<vmem>>, vector<4x256xf32>
    tpu.vector_store %arg4[%c0_19, %c0_20], %73 {strides = array<i32>} : memref<4x256xf32, #tpu.memory_space<vmem>>, vector<4x256xf32>,
    return
  }
  func.func @transform_0(%arg0: i32) -> (i32, i32) {
    %c0_i32 = arith.constant 0 : i32
    %c0_i32_0 = arith.constant 0 : i32
    return %arg0, %c0_i32 : i32, i32
  }
  func.func @transform_1(%arg0: i32) -> (i32, i32) {
    %c0_i32 = arith.constant 0 : i32
    %c0_i32_0 = arith.constant 0 : i32
    return %arg0, %c0_i32 : i32, i32
  }
  func.func @transform_2(%arg0: i32) -> (i32, i32) {
    %c0_i32 = arith.constant 0 : i32
    %c0_i32_0 = arith.constant 0 : i32
    return %arg0, %c0_i32 : i32, i32
  }
  func.func @transform_3(%arg0: i32) -> (i32, i32) {
    %c0_i32 = arith.constant 0 : i32
    %c0_i32_0 = arith.constant 0 : i32
    return %arg0, %c0_i32 : i32, i32
  }
}

</mosaic_0001>

<llo_original>
// kernel: tpu_custom_call.1
$region0: #{tpu_custom_call.1}
  #allocation0 [shape = 'u32[]', space=smem, size = 0x4, offset = 0x4, fixed_abs, tag = 'smem constant byte address 0x4 - core index']
  #allocation1 [shape = 'u32[144,128]{1,0:T(1,128)}', space=vmem, size = 0x12000, scoped, tag = 'internal scratch']
  %s0 = inlined_call_operand.hbm [shape: f32[4,256], index: 0, kind: input, shape index: {}]
  %s1 = inlined_call_operand.hbm [shape: f32[4,256], index: 1, kind: input, shape index: {}]
  %s2 = inlined_call_operand.hbm [shape: f32[4,256], index: 2, kind: output, shape index: {0}]
  %s3 = inlined_call_operand.hbm [shape: f32[4,256], index: 3, kind: output, shape index: {1}]
  %4 = xla_tuple %s2, %s3
  %s5 = sld [smem:[#allocation0]]
  $region34: #{tpu_custom_call.1} parent=0
    _
  %s7 = ssub.s32 1, %s5
  %s8 = scalar_select 0, %s7, %s5
  $region1: #{tpu_custom_call.1} parent=0
    #allocation2 [shape = 'u8[4096]{0}', space=vmem, size = 0x1000, scoped, tag = 'input window, operand 0, single buffered']
    #allocation3 [shape = 's32[1]{0}', space=sflag, size = 0x4, scoped, tag = 'scoped memory for tpu_custom_call.1']
    #allocation4 [shape = 's32[1]{0}', space=sflag, size = 0x4, scoped, tag = 'scoped memory for tpu_custom_call.1']
    #allocation5 [shape = 'u8[4096]{0}', space=vmem, size = 0x1000, scoped, tag = 'input window, operand 1, single buffered']
    #allocation6 [shape = 's32[1]{0}', space=sflag, size = 0x4, scoped, tag = 'scoped memory for tpu_custom_call.1']
    #allocation7 [shape = 'u8[4096]{0}', space=vmem, size = 0x1000, scoped, tag = 'output window, operand 0, single buffered']
    #allocation8 [shape = 'u8[4096]{0}', space=vmem, size = 0x1000, scoped, tag = 'output window, operand 1, single buffered']
    #allocation9 [shape = 's32[1]{0}', space=sflag, size = 0x4, scoped, tag = 'scoped memory for tpu_custom_call.1']
    %9 = vsyncpa [#allocation3], 0
    %10 = vsyncpa [#allocation6], 0
    %11 = vsyncpa [#allocation4], 0
    %12 = vsyncpa [#allocation9], 0
    // Predicated region
    $region2: #{tpu_custom_call.1} parent=1 // pred_check
      _
    $region3: #{tpu_custom_call.1} parent=1 // pred_check_branch
      %14 = sbr.rel (0) target = $region5
    $region4: #{tpu_custom_call.1} parent=1 // pred_region
      %s16 = ssub.s32 128, 128
      %17 = vsyncadd [#allocation3], %s16
      %s19 = sshll.u32 [#allocation2], 4
      %s20 = int_to_ptr.vmem [resolvable:$true] %s19
      %22 = dma.hbm_to_vmem [thread:$0]  %s0, 128, %s20, [#allocation3]
    $region5: #{tpu_custom_call.1} parent=1 // pred_fallthru
      _
    // Predicated region
    $region6: #{tpu_custom_call.1} parent=1 // pred_check
      _
    $region7: #{tpu_custom_call.1} parent=1 // pred_check_branch
      %24 = sbr.rel (0) target = $region9
    $region8: #{tpu_custom_call.1} parent=1 // pred_region
      %s26 = ssub.s32 128, 128
      %27 = vsyncadd [#allocation6], %s26
      %s29 = sshll.u32 [#allocation5], 4
      %s30 = int_to_ptr.vmem [resolvable:$true] %s29
      %32 = dma.hbm_to_vmem [thread:$0]  %s1, 128, %s30, [#allocation6]
    $region9: #{tpu_custom_call.1} parent=1 // pred_fallthru
      _
    // Predicated region
    $region10: #{tpu_custom_call.1} parent=1 // pred_check
      _
    $region11: #{tpu_custom_call.1} parent=1 // pred_check_branch
      %34 = sbr.rel (0) target = $region13
    $region12: #{tpu_custom_call.1} parent=1 // pred_region
      %35 = dma.done [#allocation3], 128
    $region13: #{tpu_custom_call.1} parent=1 // pred_fallthru
      _
    // Predicated region
    $region14: #{tpu_custom_call.1} parent=1 // pred_check
      _
    $region15: #{tpu_custom_call.1} parent=1 // pred_check_branch
      %37 = sbr.rel (0) target = $region17
    $region16: #{tpu_custom_call.1} parent=1 // pred_region
      %38 = dma.done [#allocation6], 128
    $region17: #{tpu_custom_call.1} parent=1 // pred_fallthru
      _
    %v39 = vld [vmem:[#allocation2] sm:$0xff]
    %v40 = vld [vmem:[#allocation5] sm:$0xff]
    %v41 = vlaneseq
    %v42 = vand.u32 %v41, 127
    %v43 = vadd.s32 %v42, 128
    %vm44 = vcmp.lt.s32.totalorder %v42, 0
    %v45 = vsub.s32 0, %v42
    %v46 = vsel %vm44, %v45, %v42
    %v47 = vmul.u32.u64.compose %v46, 4042322161
    %v48 = vextract.low.u32 %v47
    %v49 = vextract.high.u32 %v47
    %v50 = vshrl.u32 %v49, 4
    %v51 = vmul.u32 %v50, 17
    %v52 = vsub.s32 %v46, %v51
    %v53 = vsub.s32 0, %v52
    %v54 = vsel %vm44, %v53, %v52
    %vm55 = vcmp.lt.s32.totalorder %v43, 0
    %v56 = vsub.s32 0, %v43
    %v57 = vsel %vm55, %v56, %v43
    %v58 = vmul.u32.u64.compose %v57, 4042322161
    %v59 = vextract.low.u32 %v58
    %v60 = vextract.high.u32 %v58
    %v61 = vshrl.u32 %v60, 4
    %v62 = vmul.u32 %v61, 17
    %v63 = vsub.s32 %v57, %v62
    %v64 = vsub.s32 0, %v63
    %v65 = vsel %vm55, %v64, %v63
    %vm66 = vcmp.ne.s32.totalorder %v54, 0
    %vm67 = vcmp.ne.s32.totalorder %v65, 0
    %vm68 = vcmp.lt.s32.totalorder %v54, 0
    %vm69 = vcmp.lt.s32.totalorder %v65, 0
    %vm70 = vmand %vm68, %vm66
    %vm71 = vmand %vm69, %vm67
    %v72 = vadd.s32 %v54, 17
    %v73 = vadd.s32 %v65, 17
    %v74 = vsel %vm70, %v72, %v54
    %v75 = vsel %vm71, %v73, %v65
    %vm76 = vcmp.eq.s32.totalorder %v74, 0
    %vm77 = vcmp.eq.s32.totalorder %v75, 0
    %vm78 = vcmp.lt.s32.totalorder %v42, 256
    %vm79 = vcmp.lt.s32.totalorder %v43, 256
    %vm80 = vmand %vm76, %vm78
    %vm81 = vmand %vm77, %vm79
    %v82 = vsel %vm80, 1, 0
    %v83 = vsel %vm81, 1, 0
    %vm84 = vcmp.eq.s32.totalorder %v82, 1
    %vm85 = vcmp.eq.s32.totalorder %v83, 1
    %v87 = vcombine.high %v39, %v39
    %v89 = vsel %vm84, %v39, -3e+38
    %v90 = vsel %vm85, %v87, -3e+38
    %vm91 = vcmask 1043456
    %v92 = vsel %vm91, %v89, -inf
    %v93 = vsel %vm91, %v90, -inf
    %v94 = vmax.f32 %v92, %v93
    %95 = vmax.xlane.f32.xlu0 %v94
    %v96 = vpop.xlane.xlu0 %95
    %v99 = vunpack.c.l.s4 839922192
    %v100 = vunpack.c.0.s8 %v99
    %v101 = vlaneseq
    %v102 = vshrl.u32 %v101, 7
    %v103 = vsub.s32 %v100, %v102
    %v104 = vrot.slane %v96, %v103
    %v106 = vsub.f32 %v39, %v104
    %v108 = vcombine.high %v106, %v106
    %v110 = vsel %vm84, %v106, 0.0
    %v111 = vsel %vm85, %v108, 0.0
    %v112 = vmul.f32 %v110, 1.442695
    %v113 = vpow.pop %v112
    %v114 = vmul.f32 %v111, 1.442695
    %v115 = vpow.pop %v114
    %v116 = vsel %vm84, %v113, 0.0
    %v117 = vsel %vm85, %v115, 0.0
    %v118 = vsel %vm91, %v116, 0.0
    %v119 = vsel %vm91, %v117, 0.0
    %v120 = vadd.f32 %v118, %v119
    %121 = vadd.xlane.f32.xlu0 %v120
    %v122 = vpop.xlane.xlu0 %121
    %v123 = vrcp.pop %v122
    %v124 = vmul.f32 %v116, %v123
    %v125 = vmul.f32 %v117, %v123
    %v128 = vunpack.c.l.s4 839922192
    %v129 = vunpack.c.0.s8 %v128
    %v130 = vlaneseq
    %v131 = vshrl.u32 %v130, 7
    %v132 = vsub.s32 %v129, %v131
    %v133 = vrot.slane %v122, %v132
    %v135 = vmul.f32 %v39, %v133
    %v136 = vsel %vm84, %v113, 1.0
    %v137 = vsel %vm85, %v115, 1.0
    %v140 = vcombine.low %v136, %v137
    %v142 = vrcp.pop %v140
    %v143 = vmul.f32 %v135, %v142
    %v145 = vcombine.high %v143, %v143
    %v147 = vsel %vm84, %v143, -3e+38
    %v148 = vsel %vm85, %v145, -3e+38
    %v149 = vsel %vm91, %v147, -inf
    %v150 = vsel %vm91, %v148, -inf
    %v151 = vmax.f32 %v149, %v150
    %152 = vmax.xlane.f32.xlu0 %v151
    %v153 = vpop.xlane.xlu0 %152
    %v154 = vrcp.pop %v153
    %v155 = vmul.f32 1.0, %v154
    %v158 = vunpack.c.l.s4 839922192
    %v159 = vunpack.c.0.s8 %v158
    %v160 = vlaneseq
    %v161 = vshrl.u32 %v160, 7
    %v162 = vsub.s32 %v159, %v161
    %v163 = vrot.slane %v155, %v162
    %v165 = vmul.f32 %v39, %v163
    %v167 = vcombine.high %v165, %v165
    %v169 = vsel %vm84, %v124, %v165
    %v170 = vsel %vm85, %v125, %v167
    %v173 = vcombine.low %v169, %v170
    %175 = vst [vmem:[#allocation7] sm:$0xff] %v173
    %v176 = vmul.f32 %v40, %v163
    %v178 = vcombine.high %v176, %v176
    %v180 = vsel %vm84, 0.0, %v176
    %v181 = vsel %vm85, 0.0, %v178
    %v184 = vcombine.low %v180, %v181
    %186 = vst [vmem:[#allocation8] sm:$0xff] %v184
    // Predicated region
    $region18: #{tpu_custom_call.1} parent=1 // pred_check
      _
    $region19: #{tpu_custom_call.1} parent=1 // pred_check_branch
      %188 = sbr.rel (0) target = $region21
    $region20: #{tpu_custom_call.1} parent=1 // pred_region
      %s190 = ssub.s32 128, 128
      %191 = vsyncadd [#allocation4], %s190
      %s193 = sshll.u32 [#allocation7], 4
      %s194 = int_to_ptr.vmem [resolvable:$true] %s193
      %196 = dma.vmem_to_hbm [thread:$0]  %s194, 128, %s2, [#allocation4]
    $region21: #{tpu_custom_call.1} parent=1 // pred_fallthru
      _
    // Predicated region
    $region22: #{tpu_custom_call.1} parent=1 // pred_check
      _
    $region23: #{tpu_custom_call.1} parent=1 // pred_check_branch
      %198 = sbr.rel (0) target = $region25
    $region24: #{tpu_custom_call.1} parent=1 // pred_region
      %s200 = ssub.s32 128, 128
      %201 = vsyncadd [#allocation9], %s200
      %s203 = sshll.u32 [#allocation8], 4
      %s204 = int_to_ptr.vmem [resolvable:$true] %s203
      %206 = dma.vmem_to_hbm [thread:$0]  %s204, 128, %s3, [#allocation9]
    $region25: #{tpu_custom_call.1} parent=1 // pred_fallthru
      _
    // Predicated region
    $region26: #{tpu_custom_call.1} parent=1 // pred_check
      _
    $region27: #{tpu_custom_call.1} parent=1 // pred_check_branch
      %208 = sbr.rel (0) target = $region29
    $region28: #{tpu_custom_call.1} parent=1 // pred_region
      %209 = dma.done [#allocation4], 128
    $region29: #{tpu_custom_call.1} parent=1 // pred_fallthru
      _
    // Predicated region
    $region30: #{tpu_custom_call.1} parent=1 // pred_check
      _
    $region31: #{tpu_custom_call.1} parent=1 // pred_check_branch
      %211 = sbr.rel (0) target = $region33
    $region32: #{tpu_custom_call.1} parent=1 // pred_region
      %212 = dma.done [#allocation9], 128
    $region33: #{tpu_custom_call.1} parent=1 // pred_fallthru
      _
    %213 = vsyncpa [#allocation3], 1
    %214 = vsyncpa [#allocation6], 1
    %215 = vsyncpa [#allocation4], 1
    %216 = vsyncpa [#allocation9], 1

</llo_original>
